<compile_context>
chip_gen: v5e
topology: v5e:2x2
jax: 0.10.0
libtpu: 0.0.40
codegen_flags: <defaults>
</compile_context>

<pallas_src>
import jax
import jax.numpy as jnp
from jax.experimental import pallas as pl
from jax.experimental.pallas import tpu as pltpu

NUM_TASK = 2
HPAD = 128            # lane-dense padded width for the hidden feature dims
MAX_TILE_B = 2048     # batch-tile cap (amortizes ~0.35us fixed per-grid-step overhead)
MIN_GRID_STEPS = 4    # when tiling, keep >=4 steps so v7x's 2 TensorCores both run


def _round_up(x, m):
    return (x + m - 1) // m * m


def mlp_kernel(x_ref, w1_ref, b1_ref, w2_ref, b2_ref, w3_ref, b3_ref, out_ref):
    """One batch tile: x (tile_b, p) f32 -> out (tile_b, num_task) f32.

    Weights are bf16 with hidden dims pre-padded to 128 (padded lanes are
    mathematically inert: relu(0)=0, tanh(0)=0).  Matmuls accumulate in f32 on
    the MXU; biases and activation math stay f32 (safe on v5e: no bf16 VPU/EUP).
    """
    x = x_ref[...].astype(jnp.bfloat16)                                   # in-kernel cast
    h1 = jnp.dot(x, w1_ref[...], preferred_element_type=jnp.float32) + b1_ref[...]
    h1 = jnp.maximum(h1, 0.0)                                             # relu   (VPU)
    h2 = jnp.dot(h1.astype(jnp.bfloat16), w2_ref[...],
                 preferred_element_type=jnp.float32) + b2_ref[...]
    h2 = jnp.tanh(h2)                                                     # tanh   (EUP)
    logits = jnp.dot(h2.astype(jnp.bfloat16), w3_ref[...],
                     preferred_element_type=jnp.float32) + b3_ref[...]
    out_ref[...] = jax.nn.sigmoid(logits)                                 # sigmoid(EUP)


def prepare_params(params):
    """One-time (per model) weight prep, hoisted out of the per-call path.

    Hidden feature dims are zero-padded to 128 lanes and weights cast to bf16;
    the final output dim is left at num_task so the kernel emits a narrow,
    unpadded output.  Biases stay f32.
    """
    w1, b1, w2, b2, w3, b3 = params          # logical: (p,100),(1,100),(100,30),...
    p = w1.shape[0]
    h1_dim, h2_dim = w1.shape[1], w2.shape[1]
    num_task = w3.shape[1]

    def pad2(a, rows, cols):
        return jnp.pad(a, ((0, rows - a.shape[0]), (0, cols - a.shape[1])))

    h1p = _round_up(h1_dim, HPAD)
    h2p = _round_up(h2_dim, HPAD)

    w1p = pad2(w1, p, h1p).astype(jnp.bfloat16)
    w2p = pad2(w2, h1p, h2p).astype(jnp.bfloat16)
    w3p = pad2(w3, h2p, num_task).astype(jnp.bfloat16)
    b1p = pad2(b1, 1, h1p).astype(jnp.float32)
    b2p = pad2(b2, 1, h2p).astype(jnp.float32)
    b3p = b3.astype(jnp.float32)
    return w1p, b1p, w2p, b2p, w3p, b3p


def fully_connected_network(x, prepared_params):
    """Forward pass sigmoid(tanh(relu(x@W1+b1)@W2+b2)@W3+b3); x stays f32."""
    w1p, b1p, w2p, b2p, w3p, b3p = prepared_params
    B, p = x.shape
    num_task = w3p.shape[1]
    h1p, h2p = w1p.shape[1], w2p.shape[1]

    # Batch tiling: one full-batch step when small; otherwise 8-row-aligned
    # tiles capped at MAX_TILE_B with >= MIN_GRID_STEPS grid steps.  A ragged
    # last tile relies on Pallas boundary masking (rows past B are never
    # stored; the MLP is row-independent), so x is never padded or copied.
    if B <= MAX_TILE_B:
        tile_b = B
    else:
        tile_b = min(MAX_TILE_B, _round_up(-(-B // MIN_GRID_STEPS), 8))
    grid = (pl.cdiv(B, tile_b),)

    # Advisory cost hint with the true post-fix traffic (f32 x read, bf16
    # weights, narrow f32 output).
    flops = 2 * B * (p * h1p + h1p * h2p + h2p * num_task)
    transcendentals = B * (h2p + num_task)
    bytes_accessed = (x.size * 4
                      + (w1p.size + w2p.size + w3p.size) * 2
                      + (b1p.size + b2p.size + b3p.size) * 4
                      + B * num_task * 4)

    def resident(a):
        # Grid-invariant block index -> DMA'd once, stays resident in VMEM.
        return pl.BlockSpec(a.shape, lambda i: (0, 0))

    return pl.pallas_call(
        mlp_kernel,
        out_shape=jax.ShapeDtypeStruct((B, num_task), jnp.float32),
        grid=grid,
        in_specs=[
            pl.BlockSpec((tile_b, p), lambda i: (i, 0)),   # streamed x tile (double-buffered)
            resident(w1p), resident(b1p),
            resident(w2p), resident(b2p),
            resident(w3p), resident(b3p),
        ],
        # Narrow output block: 4*num_task B/row writeback instead of a padded
        # 128-wide store plus a wrapper slice pass.
        out_specs=pl.BlockSpec((tile_b, num_task), lambda i: (i, 0)),
        compiler_params=pltpu.CompilerParams(
            dimension_semantics=("parallel",)),
        cost_estimate=pl.CostEstimate(
            flops=flops,
            transcendentals=transcendentals,
            bytes_accessed=bytes_accessed),
    )(x, w1p, b1p, w2p, b2p, w3p, b3p)


def init_params(key, p, num_task):
    """Deterministic init mimicking nn.Linear default (uniform +/- 1/sqrt(fan_in))."""
    def linear(key, fan_in, fan_out):
        kw, kb = jax.random.split(key)
        bound = 1.0 / jnp.sqrt(fan_in)
        # Stored as (in, out): kernel computes x @ W (== PyTorch x @ W_pt.T).
        w = jax.random.uniform(kw, (fan_in, fan_out), jnp.float32, -bound, bound)
        b = jax.random.uniform(kb, (1, fan_out), jnp.float32, -bound, bound)
        return w, b

    k1, k2, k3 = jax.random.split(key, 3)
    w1, b1 = linear(k1, p, 100)
    w2, b2 = linear(k2, 100, 30)
    w3, b3 = linear(k3, 30, num_task)
    return w1, b1, w2, b2, w3, b3


if __name__ == "__main__":
    key = jax.random.PRNGKey(0)
    k_x, k_p = jax.random.split(key)

    B, p = 8, 32  # small batch, p input features
    x = jax.random.normal(k_x, (B, p), jnp.float32)
    params = init_params(k_p, p, NUM_TASK)
    prepared = prepare_params(params)        # one-time weight prep (hoisted out of fwd)

    out = jax.block_until_ready(fully_connected_network(x, prepared))

    # Reference in plain f32 JAX (same math as the PyTorch module).
    w1, b1, w2, b2, w3, b3 = params
    h = jnp.maximum(x @ w1 + b1, 0.0)
    h = jnp.tanh(h @ w2 + b2)
    ref = jax.nn.sigmoid(h @ w3 + b3)

    assert out.shape == (B, NUM_TASK)
    # bf16 matmul operands => looser tolerance vs. the pure-f32 reference.
    assert jnp.allclose(out, ref, atol=2e-2, rtol=2e-2), float(jnp.max(jnp.abs(out - ref)))

    print("KERNEL_OK")
</pallas_src>

<mosaic_0001>
module attributes {stable_mosaic.version = 11 : i64} {
  func.func @mlp_kernel(%arg0: i32, %arg1: memref<8x32xf32, #tpu.memory_space<vmem>>, %arg2: memref<32x128xbf16, #tpu.memory_space<vmem>>, %arg3: memref<1x128xf32, #tpu.memory_space<vmem>>, %arg4: memref<128x128xbf16, #tpu.memory_space<vmem>>, %arg5: memref<1x128xf32, #tpu.memory_space<vmem>>, %arg6: memref<128x2xbf16, #tpu.memory_space<vmem>>, %arg7: memref<1x2xf32, #tpu.memory_space<vmem>>, %arg8: memref<8x2xf32, #tpu.memory_space<vmem>>) attributes {dimension_semantics = [#tpu.dimension_semantics<parallel>], iteration_bounds = array<i64: 1>, scalar_prefetch = 0 : i64, scratch_operands = 0 : i64, tpu.core_type = #tpu.core_type<tc>, window_params = [{transform_indices = @transform_0, window_bounds = array<i64: 8, 32>}, {pipeline_mode = #tpu.pipeline_mode<synchronous>, transform_indices = @transform_1, window_bounds = array<i64: 32, 128>}, {pipeline_mode = #tpu.pipeline_mode<synchronous>, transform_indices = @transform_2, window_bounds = array<i64: 1, 128>}, {pipeline_mode = #tpu.pipeline_mode<synchronous>, transform_indices = @transform_3, window_bounds = array<i64: 128, 128>}, {pipeline_mode = #tpu.pipeline_mode<synchronous>, transform_indices = @transform_4, window_bounds = array<i64: 1, 128>}, {pipeline_mode = #tpu.pipeline_mode<synchronous>, transform_indices = @transform_5, window_bounds = array<i64: 128, 2>}, {pipeline_mode = #tpu.pipeline_mode<synchronous>, transform_indices = @transform_6, window_bounds = array<i64: 1, 2>}, {transform_indices = @transform_7, window_bounds = array<i64: 8, 2>}]} {
    %c0 = arith.constant 0 : index
    %c0_0 = arith.constant 0 : index
    %0 = vector.load %arg1[%c0, %c0_0] : memref<8x32xf32, #tpu.memory_space<vmem>>, vector<8x32xf32>
    %1 = arith.truncf %0 : vector<8x32xf32> to vector<8x32xbf16>
    %c0_1 = arith.constant 0 : index
    %c0_2 = arith.constant 0 : index
    %2 = vector.load %arg2[%c0_1, %c0_2] : memref<32x128xbf16, #tpu.memory_space<vmem>>, vector<32x128xbf16>
    %cst = arith.constant dense<0.000000e+00> : vector<8x128xf32>
    %3 = tpu.matmul %1, %2, %cst {dimension_numbers = #tpu.dot_dimension_numbers<[1], [0], [0], [1], [0, 0, 1, 1], [], []>} : vector<8x32xbf16>, vector<32x128xbf16>, vector<8x128xf32> -> vector<8x128xf32>
    %c0_3 = arith.constant 0 : index
    %c0_4 = arith.constant 0 : index
    %4 = vector.load %arg3[%c0_3, %c0_4] : memref<1x128xf32, #tpu.memory_space<vmem>>, vector<1x128xf32>
    %5 = vector.broadcast %4 : vector<1x128xf32> to vector<8x128xf32>
    %6 = arith.addf %3, %5 : vector<8x128xf32>
    %cst_5 = arith.constant 0.000000e+00 : f32
    %7 = vector.broadcast %cst_5 : f32 to vector<8x128xf32>
    %8 = arith.maximumf %6, %7 : vector<8x128xf32>
    %9 = arith.truncf %8 : vector<8x128xf32> to vector<8x128xbf16>
    %c0_6 = arith.constant 0 : index
    %c0_7 = arith.constant 0 : index
    %10 = vector.load %arg4[%c0_6, %c0_7] : memref<128x128xbf16, #tpu.memory_space<vmem>>, vector<128x128xbf16>
    %cst_8 = arith.constant dense<0.000000e+00> : vector<8x128xf32>
    %11 = tpu.matmul %9, %10, %cst_8 {dimension_numbers = #tpu.dot_dimension_numbers<[1], [0], [0], [1], [0, 0, 1, 1], [], []>} : vector<8x128xbf16>, vector<128x128xbf16>, vector<8x128xf32> -> vector<8x128xf32>
    %c0_9 = arith.constant 0 : index
    %c0_10 = arith.constant 0 : index
    %12 = vector.load %arg5[%c0_9, %c0_10] : memref<1x128xf32, #tpu.memory_space<vmem>>, vector<1x128xf32>
    %13 = vector.broadcast %12 : vector<1x128xf32> to vector<8x128xf32>
    %14 = arith.addf %11, %13 : vector<8x128xf32>
    %15 = math.tanh %14 : vector<8x128xf32>
    %16 = arith.truncf %15 : vector<8x128xf32> to vector<8x128xbf16>
    %c0_11 = arith.constant 0 : index
    %c0_12 = arith.constant 0 : index
    %17 = vector.load %arg6[%c0_11, %c0_12] : memref<128x2xbf16, #tpu.memory_space<vmem>>, vector<128x2xbf16>
    %cst_13 = arith.constant dense<0.000000e+00> : vector<8x2xf32>
    %18 = tpu.matmul %16, %17, %cst_13 {dimension_numbers = #tpu.dot_dimension_numbers<[1], [0], [0], [1], [0, 0, 1, 1], [], []>} : vector<8x128xbf16>, vector<128x2xbf16>, vector<8x2xf32> -> vector<8x2xf32>
    %c0_14 = arith.constant 0 : index
    %c0_15 = arith.constant 0 : index
    %19 = vector.load %arg7[%c0_14, %c0_15] : memref<1x2xf32, #tpu.memory_space<vmem>>, vector<1x2xf32>
    %20 = vector.broadcast %19 : vector<1x2xf32> to vector<8x2xf32>
    %21 = arith.addf %18, %20 : vector<8x2xf32>
    %22 = arith.negf %21 : vector<8x2xf32>
    %23 = math.exp %22 : vector<8x2xf32>
    %cst_16 = arith.constant 1.000000e+00 : f32
    %24 = vector.broadcast %cst_16 : f32 to vector<8x2xf32>
    %25 = arith.addf %24, %23 : vector<8x2xf32>
    %26 = arith.divf %24, %25 : vector<8x2xf32>
    %c0_17 = arith.constant 0 : index
    %c0_18 = arith.constant 0 : index
    %27 = vector.load %arg8[%c0_17, %c0_18] : memref<8x2xf32, #tpu.memory_space<vmem>>, vector<8x2xf32>
    tpu.vector_store %arg8[%c0_17, %c0_18], %26 {strides = array<i32>} : memref<8x2xf32, #tpu.memory_space<vmem>>, vector<8x2xf32>,
    return
  }
  func.func @transform_0(%arg0: i32) -> (i32, i32) {
    %c0_i32 = arith.constant 0 : i32
    %c0_i32_0 = arith.constant 0 : i32
    return %arg0, %c0_i32 : i32, i32
  }
  func.func @transform_1(%arg0: i32) -> (i32, i32) {
    %c0_i32 = arith.constant 0 : i32
    %c0_i32_0 = arith.constant 0 : i32
    %c0_i32_1 = arith.constant 0 : i32
    return %c0_i32, %c0_i32_0 : i32, i32
  }
  func.func @transform_2(%arg0: i32) -> (i32, i32) {
    %c0_i32 = arith.constant 0 : i32
    %c0_i32_0 = arith.constant 0 : i32
    %c0_i32_1 = arith.constant 0 : i32
    return %c0_i32, %c0_i32_0 : i32, i32
  }
  func.func @transform_3(%arg0: i32) -> (i32, i32) {
    %c0_i32 = arith.constant 0 : i32
    %c0_i32_0 = arith.constant 0 : i32
    %c0_i32_1 = arith.constant 0 : i32
    return %c0_i32, %c0_i32_0 : i32, i32
  }
  func.func @transform_4(%arg0: i32) -> (i32, i32) {
    %c0_i32 = arith.constant 0 : i32
    %c0_i32_0 = arith.constant 0 : i32
    %c0_i32_1 = arith.constant 0 : i32
    return %c0_i32, %c0_i32_0 : i32, i32
  }
  func.func @transform_5(%arg0: i32) -> (i32, i32) {
    %c0_i32 = arith.constant 0 : i32
    %c0_i32_0 = arith.constant 0 : i32
    %c0_i32_1 = arith.constant 0 : i32
    return %c0_i32, %c0_i32_0 : i32, i32
  }
  func.func @transform_6(%arg0: i32) -> (i32, i32) {
    %c0_i32 = arith.constant 0 : i32
    %c0_i32_0 = arith.constant 0 : i32
    %c0_i32_1 = arith.constant 0 : i32
    return %c0_i32, %c0_i32_0 : i32, i32
  }
  func.func @transform_7(%arg0: i32) -> (i32, i32) {
    %c0_i32 = arith.constant 0 : i32
    %c0_i32_0 = arith.constant 0 : i32
    return %arg0, %c0_i32 : i32, i32
  }
}

</mosaic_0001>

<llo_original>
// kernel: tpu_custom_call.1
$region0: #{tpu_custom_call.1}
  #allocation0 [shape = 'u32[]', space=smem, size = 0x4, offset = 0x4, fixed_abs, tag = 'smem constant byte address 0x4 - core index']
  #allocation1 [shape = 'u32[72,128]{1,0:T(1,128)}', space=vmem, size = 0x9000, scoped, tag = 'internal scratch']
  %s0 = inlined_call_operand.hbm [shape: f32[8,32], index: 0, kind: input, shape index: {}]
  %s1 = inlined_call_operand.hbm [shape: bf16[32,128], index: 1, kind: input, shape index: {}]
  %s2 = inlined_call_operand.vmem [shape: f32[1,128], index: 2, kind: input, shape index: {}]
  %s3 = inlined_call_operand.vmem [shape: bf16[128,128], index: 3, kind: input, shape index: {}]
  %s4 = inlined_call_operand.vmem [shape: f32[1,128], index: 4, kind: input, shape index: {}]
  %s5 = inlined_call_operand.vmem [shape: bf16[128,2], index: 5, kind: input, shape index: {}]
  %s6 = inlined_call_operand.vmem [shape: f32[1,2], index: 6, kind: input, shape index: {}]
  %s7 = inlined_call_operand.vmem [shape: f32[8,2], index: 7, kind: output, shape index: {}]
  %s8 = sld [smem:[#allocation0]]
  $region46: #{tpu_custom_call.1} parent=0
    _
  %s10 = ssub.s32 1, %s8
  %s11 = scalar_select 0, %s10, %s8
  $region1: #{tpu_custom_call.1} parent=0
    #allocation2 [shape = 'u8[4096]{0}', space=vmem, size = 0x1000, scoped, tag = 'input window, operand 0, single buffered']
    #allocation3 [shape = 's32[1]{0}', space=sflag, size = 0x4, scoped, tag = 'scoped memory for tpu_custom_call.1']
    #allocation4 [shape = 'u8[8192]{0}', space=vmem, size = 0x2000, scoped, tag = 'input window, operand 1, single buffered']
    #allocation5 [shape = 's32[1]{0}', space=sflag, size = 0x4, scoped, tag = 'scoped memory for tpu_custom_call.1']
    %12 = vsyncpa [#allocation3], 0
    %13 = vsyncpa [#allocation5], 0
    // Predicated region
    $region2: #{tpu_custom_call.1} parent=1 // pred_check
      _
    $region3: #{tpu_custom_call.1} parent=1 // pred_check_branch
      %15 = sbr.rel (0) target = $region5
    $region4: #{tpu_custom_call.1} parent=1 // pred_region
      %17 = vsyncadd [#allocation3], 0
      %s19 = sshll.u32 %s0, 4
      %s20 = int_to_ptr.hbm [resolvable:$true] %s19
      %s21 = sshll.u32 [#allocation2], 4
      %s22 = int_to_ptr.vmem [resolvable:$true] %s21
      %24 = dma.hbm_to_vmem [thread:$0]  %s20, 128, %s22, [#allocation3]
    $region5: #{tpu_custom_call.1} parent=1 // pred_fallthru
      _
    // Predicated region
    $region6: #{tpu_custom_call.1} parent=1 // pred_check
      _
    $region7: #{tpu_custom_call.1} parent=1 // pred_check_branch
      %26 = sbr.rel (0) target = $region9
    $region8: #{tpu_custom_call.1} parent=1 // pred_region
      %28 = vsyncadd [#allocation5], 0
      %s29 = sshll.u32 %s1, 4
      %s30 = int_to_ptr.hbm [resolvable:$true] %s29
      %s31 = sshll.u32 [#allocation4], 4
      %s32 = int_to_ptr.vmem [resolvable:$true] %s31
      %37 = dma.hbm_to_vmem [thread:$0]  %s30, 256, %s32, [#allocation5], 64, 64, 4
    $region9: #{tpu_custom_call.1} parent=1 // pred_fallthru
      _
    // Predicated region
    $region10: #{tpu_custom_call.1} parent=1 // pred_check
      _
    $region11: #{tpu_custom_call.1} parent=1 // pred_check_branch
      %39 = sbr.rel (0) target = $region13
    $region12: #{tpu_custom_call.1} parent=1 // pred_region
      _
    $region13: #{tpu_custom_call.1} parent=1 // pred_fallthru
      _
    // Predicated region
    $region14: #{tpu_custom_call.1} parent=1 // pred_check
      _
    $region15: #{tpu_custom_call.1} parent=1 // pred_check_branch
      %41 = sbr.rel (0) target = $region17
    $region16: #{tpu_custom_call.1} parent=1 // pred_region
      _
    $region17: #{tpu_custom_call.1} parent=1 // pred_fallthru
      _
    // Predicated region
    $region18: #{tpu_custom_call.1} parent=1 // pred_check
      _
    $region19: #{tpu_custom_call.1} parent=1 // pred_check_branch
      %43 = sbr.rel (0) target = $region21
    $region20: #{tpu_custom_call.1} parent=1 // pred_region
      _
    $region21: #{tpu_custom_call.1} parent=1 // pred_fallthru
      _
    // Predicated region
    $region22: #{tpu_custom_call.1} parent=1 // pred_check
      _
    $region23: #{tpu_custom_call.1} parent=1 // pred_check_branch
      %45 = sbr.rel (0) target = $region25
    $region24: #{tpu_custom_call.1} parent=1 // pred_region
      _
    $region25: #{tpu_custom_call.1} parent=1 // pred_fallthru
      _
    // Predicated region
    $region26: #{tpu_custom_call.1} parent=1 // pred_check
      _
    $region27: #{tpu_custom_call.1} parent=1 // pred_check_branch
      %47 = sbr.rel (0) target = $region29
    $region28: #{tpu_custom_call.1} parent=1 // pred_region
      _
    $region29: #{tpu_custom_call.1} parent=1 // pred_fallthru
      _
    // Predicated region
    $region30: #{tpu_custom_call.1} parent=1 // pred_check
      _
    $region31: #{tpu_custom_call.1} parent=1 // pred_check_branch
      %49 = sbr.rel (0) target = $region33
    $region32: #{tpu_custom_call.1} parent=1 // pred_region
      %51 = dma.done [#allocation3], 128
    $region33: #{tpu_custom_call.1} parent=1 // pred_fallthru
      _
    // Predicated region
    $region34: #{tpu_custom_call.1} parent=1 // pred_check
      _
    $region35: #{tpu_custom_call.1} parent=1 // pred_check_branch
      %53 = sbr.rel (0) target = $region37
    $region36: #{tpu_custom_call.1} parent=1 // pred_region
      %55 = dma.done [#allocation5], 256
    $region37: #{tpu_custom_call.1} parent=1 // pred_fallthru
      _
    %v57 = vld [vmem:[#allocation2] sm:$0xff]
    %v58 = vpack.c.bf16 %v57, %v57
    %v59 = vld [vmem:[#allocation4] sm:$0xf]
    %v60 = vld [vmem:[#allocation4 + $0x4] sm:$0xf]
    %v61 = vld [vmem:[#allocation4 + $0x8] sm:$0xf]
    %v62 = vld [vmem:[#allocation4 + $0xc] sm:$0xf]
    %v63 = vld [vmem:[%s2] sm:$0x1]
    %v65 = vperm.slane %v63, 0
    %v71 = vunpack.c.l.b16 %v59
    %v72 = vunpack.c.l.b16 %v60
    %v73 = vunpack.c.l.b16 %v61
    %v74 = vunpack.c.l.b16 %v62
    %v75 = vpack.c.b16 %v72, %v71
    %v76 = vpack.c.b16 %v74, %v73
    %vm79 = vcmask 261120
    %v81 = vsel %vm79, %v58, 0
    %83 = vmatpush.bf16.msra.mxu0 0
    %84 = vmatpush.bf16.msra.mxu0 0
    %85 = vmatpush.bf16.msra.mxu0 0
    %86 = vmatpush.bf16.msra.mxu0 0
    %87 = vmatpush.bf16.msra.mxu0 0
    %88 = vmatpush.bf16.msra.mxu0 0
    %89 = vmatpush.bf16.msra.mxu0 %v76
    %90 = vmatpush.bf16.msra.mxu0 %v75
    %91 = vmatmul.bf16.gmra.mxu0 %v81
    %v92 = vpop.f32.mrf.mxu0
    %v93 = vadd.f32 %v65, %v92
    %v94 = vpop.f32.mrf.mxu0
    %95 = vdwg.mxu0
    %v96 = vmax.f32 %v93, 0.0
    %v97 = vpack.c.bf16 %v96, %v96
    %v98 = vld [vmem:[%s3] sm:$0xf]
    %v99 = vld [vmem:[%s3 + $0x4] sm:$0xf]
    %v100 = vld [vmem:[%s3 + $0x8] sm:$0xf]
    %v101 = vld [vmem:[%s3 + $0xc] sm:$0xf]
    %v102 = vld [vmem:[%s3 + $0x10] sm:$0xf]
    %v103 = vld [vmem:[%s3 + $0x14] sm:$0xf]
    %v104 = vld [vmem:[%s3 + $0x18] sm:$0xf]
    %v105 = vld [vmem:[%s3 + $0x1c] sm:$0xf]
    %v106 = vld [vmem:[%s3 + $0x20] sm:$0xf]
    %v107 = vld [vmem:[%s3 + $0x24] sm:$0xf]
    %v108 = vld [vmem:[%s3 + $0x28] sm:$0xf]
    %v109 = vld [vmem:[%s3 + $0x2c] sm:$0xf]
    %v110 = vld [vmem:[%s3 + $0x30] sm:$0xf]
    %v111 = vld [vmem:[%s3 + $0x34] sm:$0xf]
    %v112 = vld [vmem:[%s3 + $0x38] sm:$0xf]
    %v113 = vld [vmem:[%s3 + $0x3c] sm:$0xf]
    %v114 = vld [vmem:[%s4] sm:$0x1]
    %v116 = vperm.slane %v114, 0
    %v134 = vunpack.c.l.b16 %v98
    %v135 = vunpack.c.l.b16 %v99
    %v136 = vunpack.c.l.b16 %v100
    %v137 = vunpack.c.l.b16 %v101
    %v138 = vunpack.c.l.b16 %v102
    %v139 = vunpack.c.l.b16 %v103
    %v140 = vunpack.c.l.b16 %v104
    %v141 = vunpack.c.l.b16 %v105
    %v142 = vunpack.c.l.b16 %v106
    %v143 = vunpack.c.l.b16 %v107
    %v144 = vunpack.c.l.b16 %v108
    %v145 = vunpack.c.l.b16 %v109
    %v146 = vunpack.c.l.b16 %v110
    %v147 = vunpack.c.l.b16 %v111
    %v148 = vunpack.c.l.b16 %v112
    %v149 = vunpack.c.l.b16 %v113
    %v150 = vpack.c.b16 %v135, %v134
    %v151 = vpack.c.b16 %v137, %v136
    %v152 = vpack.c.b16 %v139, %v138
    %v153 = vpack.c.b16 %v141, %v140
    %v154 = vpack.c.b16 %v143, %v142
    %v155 = vpack.c.b16 %v145, %v144
    %v156 = vpack.c.b16 %v147, %v146
    %v157 = vpack.c.b16 %v149, %v148
    %166 = vmatpush.bf16.msra.mxu0 %v157
    %167 = vmatpush.bf16.msra.mxu0 %v156
    %168 = vmatpush.bf16.msra.mxu0 %v155
    %169 = vmatpush.bf16.msra.mxu0 %v154
    %170 = vmatpush.bf16.msra.mxu0 %v153
    %171 = vmatpush.bf16.msra.mxu0 %v152
    %172 = vmatpush.bf16.msra.mxu0 %v151
    %173 = vmatpush.bf16.msra.mxu0 %v150
    %174 = vmatmul.bf16.gmra.mxu0 %v97
    %v175 = vpop.f32.mrf.mxu0
    %v176 = vadd.f32 %v116, %v175
    %v177 = vpop.f32.mrf.mxu0
    %178 = vdwg.mxu0
    %v179 = vtanh.pop %v176
    %v180 = vpack.c.bf16 %v179, %v179
    %v181 = vld [vmem:[%s5] sm:$0xf]
    %v182 = vld [vmem:[%s5 + $0x4] sm:$0xf]
    %v183 = vld [vmem:[%s5 + $0x8] sm:$0xf]
    %v184 = vld [vmem:[%s5 + $0xc] sm:$0xf]
    %v185 = vld [vmem:[%s5 + $0x10] sm:$0xf]
    %v186 = vld [vmem:[%s5 + $0x14] sm:$0xf]
    %v187 = vld [vmem:[%s5 + $0x18] sm:$0xf]
    %v188 = vld [vmem:[%s5 + $0x1c] sm:$0xf]
    %v189 = vld [vmem:[%s5 + $0x20] sm:$0xf]
    %v190 = vld [vmem:[%s5 + $0x24] sm:$0xf]
    %v191 = vld [vmem:[%s5 + $0x28] sm:$0xf]
    %v192 = vld [vmem:[%s5 + $0x2c] sm:$0xf]
    %v193 = vld [vmem:[%s5 + $0x30] sm:$0xf]
    %v194 = vld [vmem:[%s5 + $0x34] sm:$0xf]
    %v195 = vld [vmem:[%s5 + $0x38] sm:$0xf]
    %v196 = vld [vmem:[%s5 + $0x3c] sm:$0xf]
    %v197 = vld [vmem:[%s6] sm:$0x1]
    %v199 = vperm.slane %v197, 0
    %v217 = vunpack.c.l.b16 %v181
    %v218 = vunpack.c.l.b16 %v182
    %v219 = vunpack.c.l.b16 %v183
    %v220 = vunpack.c.l.b16 %v184
    %v221 = vunpack.c.l.b16 %v185
    %v222 = vunpack.c.l.b16 %v186
    %v223 = vunpack.c.l.b16 %v187
    %v224 = vunpack.c.l.b16 %v188
    %v225 = vunpack.c.l.b16 %v189
    %v226 = vunpack.c.l.b16 %v190
    %v227 = vunpack.c.l.b16 %v191
    %v228 = vunpack.c.l.b16 %v192
    %v229 = vunpack.c.l.b16 %v193
    %v230 = vunpack.c.l.b16 %v194
    %v231 = vunpack.c.l.b16 %v195
    %v232 = vunpack.c.l.b16 %v196
    %v233 = vpack.c.b16 %v218, %v217
    %v234 = vpack.c.b16 %v220, %v219
    %v235 = vpack.c.b16 %v222, %v221
    %v236 = vpack.c.b16 %v224, %v223
    %v237 = vpack.c.b16 %v226, %v225
    %v238 = vpack.c.b16 %v228, %v227
    %v239 = vpack.c.b16 %v230, %v229
    %v240 = vpack.c.b16 %v232, %v231
    %249 = vmatpush.bf16.msra.mxu0 %v240
    %250 = vmatpush.bf16.msra.mxu0 %v239
    %251 = vmatpush.bf16.msra.mxu0 %v238
    %252 = vmatpush.bf16.msra.mxu0 %v237
    %253 = vmatpush.bf16.msra.mxu0 %v236
    %254 = vmatpush.bf16.msra.mxu0 %v235
    %255 = vmatpush.bf16.msra.mxu0 %v234
    %256 = vmatpush.bf16.msra.mxu0 %v233
    %257 = vmatmul.bf16.gmra.mxu0 %v180
    %v258 = vpop.f32.mrf.mxu0
    %v259 = vadd.f32 %v199, %v258
    %v260 = vpop.f32.mrf.mxu0
    %261 = vdwg.mxu0
    %v262 = vxor.u32 %v259, 2147483648
    %v263 = vmul.f32 %v262, 1.442695
    %v264 = vpow.pop %v263
    %v265 = vadd.f32 %v264, 1.0
    %v266 = vrcp.pop %v265
    %v267 = vmul.f32 %v265, %v266
    %v268 = vsub.f32 1.0, %v267
    %v269 = vmul.f32 %v266, %v268
    %v270 = vadd.f32 %v266, %v269
    %vm271 = vweird.f32 %v265
    %vm272 = vweird.f32 %v266
    %vm273 = vmor %vm271, %vm272
    %v274 = vsel %vm273, %v266, %v270
    %v275 = vand.u32 2147483647, %v265
    %vm276 = vcmp.eq.f32.partialorder %v275, 8.507059e+37
    %v277 = vand.u32 %v265, 2147483648
    %v278 = vor.u32 1.1754944e-38, %v277
    %v279 = vsel %vm276, %v278, %v274
    %v280 = vmul.f32 1.0, %v279
    %vm281 = vcmask 15360
    %282 = vst.msk [vmem:[%s7] sm:$0xff] %vm281, %v280
    // Predicated region
    $region38: #{tpu_custom_call.1} parent=1 // pred_check
      _
    $region39: #{tpu_custom_call.1} parent=1 // pred_check_branch
      %284 = sbr.rel (0) target = $region41
    $region40: #{tpu_custom_call.1} parent=1 // pred_region
      _
    $region41: #{tpu_custom_call.1} parent=1 // pred_fallthru
      _
    // Predicated region
    $region42: #{tpu_custom_call.1} parent=1 // pred_check
      _
    $region43: #{tpu_custom_call.1} parent=1 // pred_check_branch
      %286 = sbr.rel (0) target = $region45
    $region44: #{tpu_custom_call.1} parent=1 // pred_region
      _
    $region45: #{tpu_custom_call.1} parent=1 // pred_fallthru
      _
    %287 = vsyncpa [#allocation3], 1
    %288 = vsyncpa [#allocation5], 1

</llo_original>
